<compile_context>
chip_gen: v7x
topology: tpu7x:2x2x1
jax: 0.10.0
libtpu: 0.0.40
codegen_flags: <defaults>
</compile_context>

<pallas_src>
import functools
import math

import jax
import jax.numpy as jnp
from jax.experimental import pallas as pl
from jax.experimental.pallas import tpu as pltpu


def _round_up(x: int, m: int) -> int:
    return ((x + m - 1) // m) * m


def _cdiv(a: int, b: int) -> int:
    return (a + b - 1) // b


@functools.lru_cache(maxsize=None)
def _row_tile_cap() -> int:
    """256-row tiles keep the footprint under v7x's 64 MiB VMEM; allow 512 on
    chips with >=100 MiB VMEM (v5e / v6e) for fewer, fatter grid steps."""
    try:
        vmem = int(getattr(pltpu.get_tpu_info(), "vmem_capacity_bytes", 0))
    except Exception:  # conservative fallback if the query is unavailable
        vmem = 0
    return 512 if vmem >= 100 * 1024 * 1024 else 256


def _pick_tile_t(n_ctx: int) -> int:
    """Largest multiple-of-8 tile <= cap that divides a small round-up of n_ctx."""
    cap = _row_tile_cap()
    n_tiles = max(1, _cdiv(n_ctx, cap))
    return _round_up(_cdiv(n_ctx, n_tiles), 8)


def _resident_spec(block_shape):
    """BlockSpec for a grid-invariant operand: constant index_map, single buffer."""
    index_map = lambda *_: (0,) * len(block_shape)
    try:
        return pl.BlockSpec(block_shape, index_map, pipeline_mode=pl.Buffered(1))
    except Exception:  # older Pallas without pipeline_mode: fall back to default
        return pl.BlockSpec(block_shape, index_map)


# ----------------------------------------------------------------------------
# Pallas kernel: per-token MLP producing eps and var channels.
#   x   = h_tile + temb_row                      (Tt, Cp)   f32 add -> bf16
#   z   = silu(x @ W1 + b1)                      (Tt, Hp)   f32
#   out = z @ W2 + b2                            (Tt, 2Cp)  f32 (fused eps|var)
# ----------------------------------------------------------------------------
def _denoiser_kernel(h_ref, temb_ref, w1_ref, b1_ref, w2_ref, b2_ref,
                     eps_ref, var_ref):
    C_p = eps_ref.shape[-1]
    x = (h_ref[0].astype(jnp.float32) + temb_ref[0]).astype(jnp.bfloat16)   # (Tt, Cp)
    z = jnp.dot(x, w1_ref[...], preferred_element_type=jnp.float32)         # (Tt, Hp)
    z = z + b1_ref[...]
    z = z * jax.nn.sigmoid(z)                                               # f32 SiLU (EUP+VPU)
    zb = z.astype(jnp.bfloat16)
    out = jnp.dot(zb, w2_ref[...], preferred_element_type=jnp.float32)      # (Tt, 2Cp)
    out = out + b2_ref[...]
    eps_ref[0] = out[:, :C_p].astype(eps_ref.dtype)                         # lane-aligned halves
    var_ref[0] = out[:, C_p:].astype(var_ref.dtype)


def _vmem_footprint_bytes(tile_t: int, C_p: int, H_p: int) -> int:
    w = (C_p * H_p + H_p * 2 * C_p) * 2              # resident bf16 weights (1-buffered)
    b = (H_p + 2 * C_p) * 4                          # resident f32 biases
    act_in = 2 * (tile_t * C_p * 2 + C_p * 4)        # 2-buffered h (bf16) + temb (f32)
    act_out = 2 * 2 * tile_t * C_p * 4               # 2-buffered eps + var (f32)
    tmp = tile_t * (C_p * 2 + H_p * 4 + H_p * 2 + 2 * C_p * 4)  # x, z, zb, out temporaries
    return w + b + act_in + act_out + tmp


def pointwise_denoiser(h, temb, params, *, tile_t):
    """h: (B, n_ctx_p, C_p) bf16, temb: (B, 1, C_p) f32. Returns eps, var (B, n_ctx_p, C_p) f32."""
    B, n_ctx_p, C_p = h.shape
    H_p = params["w1"].shape[1]
    assert n_ctx_p % tile_t == 0 and C_p % 128 == 0 and H_p % 128 == 0

    grid = (B, n_ctx_p // tile_t)
    M = B * n_ctx_p
    flops = 2 * M * (C_p * H_p + H_p * 2 * C_p)
    bytes_accessed = (
        h.size * 2 + temb.size * 4                          # activations in (bf16 h, f32 temb)
        + (params["w1"].size + params["w2"].size) * 2       # bf16 weights
        + (params["b1"].size + params["b2"].size) * 4       # f32 biases
        + 2 * M * C_p * 4                                   # eps + var out (f32)
    )
    cost = pl.CostEstimate(flops=flops, transcendentals=M * H_p,
                           bytes_accessed=bytes_accessed)

    vmem_limit = _vmem_footprint_bytes(tile_t, C_p, H_p)
    vmem_limit = min(max(int(vmem_limit * 1.25) + (2 << 20), 32 * 1024 * 1024),
                     100 * 1024 * 1024)

    eps, var = pl.pallas_call(
        _denoiser_kernel,
        out_shape=(
            jax.ShapeDtypeStruct((B, n_ctx_p, C_p), jnp.float32),
            jax.ShapeDtypeStruct((B, n_ctx_p, C_p), jnp.float32),
        ),
        grid_spec=pltpu.PrefetchScalarGridSpec(
            num_scalar_prefetch=0,
            grid=grid,
            in_specs=[
                pl.BlockSpec((1, tile_t, C_p), lambda b, j: (b, j, 0)),  # h tile (bf16)
                pl.BlockSpec((1, 1, C_p), lambda b, j: (b, 0, 0)),       # temb row (per batch)
                _resident_spec((C_p, H_p)),                              # W1   (bf16, 1-buffered)
                _resident_spec((1, H_p)),                                # b1   (f32)
                _resident_spec((H_p, 2 * C_p)),                          # W2 = [W2_eps | W2_var]
                _resident_spec((1, 2 * C_p)),                            # b2 = [b2_eps | b2_var]
            ],
            out_specs=[
                pl.BlockSpec((1, tile_t, C_p), lambda b, j: (b, j, 0)),  # eps
                pl.BlockSpec((1, tile_t, C_p), lambda b, j: (b, j, 0)),  # var
            ],
        ),
        compiler_params=pltpu.CompilerParams(
            dimension_semantics=("parallel", "parallel"),
            vmem_limit_bytes=vmem_limit,
        ),
        cost_estimate=cost,
    )(h, temb, params["w1"], params["b1"], params["w2"], params["b2"])
    return eps, var


# ----------------------------------------------------------------------------
# Glue: SplitVectorDiffusion.forward semantics
# ----------------------------------------------------------------------------
def timestep_embedding(t, dim):
    half = dim // 2
    freqs = jnp.exp(-math.log(10000.0) * jnp.arange(half, dtype=jnp.float32) / half)
    args = t.astype(jnp.float32)[:, None] * freqs[None, :]
    return jnp.concatenate([jnp.cos(args), jnp.sin(args)], axis=-1)  # (B, dim)


@functools.partial(jax.jit, static_argnames=("n_ctx", "d_latent"))
def split_vector_diffusion_forward(x, t, params, *, n_ctx, d_latent):
    """
    x: (B, n_ctx * d_latent) f32, t: (B,) f32
    returns (B, 2 * n_ctx * d_latent) = cat([eps_flat, var_flat], dim=1)
    """
    B = x.shape[0]
    C_p = params["w1"].shape[0]                     # padded channel width (multiple of 128)
    tile_t = _pick_tile_t(n_ctx)                    # divides a small round-up of n_ctx
    n_ctx_p = _round_up(n_ctx, tile_t)

    h = x.reshape(B, n_ctx, d_latent)               # channels-last token rows
    if d_latent != C_p or n_ctx != n_ctx_p:
        # Small / no-op pad at real shap_e widths (already multiples of 128).
        h = jnp.pad(h, ((0, 0), (0, n_ctx_p - n_ctx), (0, C_p - d_latent)))
    h = h.astype(jnp.bfloat16)                      # halve activation HBM traffic / VMEM

    temb = timestep_embedding(t, d_latent)          # (B, d_latent)
    if d_latent != C_p:
        temb = jnp.pad(temb, ((0, 0), (0, C_p - d_latent)))
    temb = temb[:, None, :]                         # (B, 1, C_p) — no HBM broadcast

    eps_p, var_p = pointwise_denoiser(h, temb, params, tile_t=tile_t)

    eps = eps_p[:, :n_ctx, :d_latent].reshape(B, n_ctx * d_latent)
    var = var_p[:, :n_ctx, :d_latent].reshape(B, n_ctx * d_latent)
    return jnp.concatenate([eps, var], axis=1)


def init_params(key, d_latent, hidden):
    """Weights stored pre-padded to lane-dense widths; matmul weights in bf16.
    The output projection is stored fused as W2 = [W2_eps | W2_var]  (H_p, 2*C_p)."""
    C_p = _round_up(d_latent, 128)
    H_p = _round_up(hidden, 128)
    k1, k2, k3, k4 = jax.random.split(key, 4)
    s1 = 1.0 / math.sqrt(d_latent)
    s2 = 1.0 / math.sqrt(hidden)

    w1 = jnp.zeros((C_p, H_p), jnp.float32).at[:d_latent, :hidden].set(
        jax.random.normal(k1, (d_latent, hidden), jnp.float32) * s1)
    b1 = jnp.zeros((1, H_p), jnp.float32).at[:, :hidden].set(
        jax.random.normal(k2, (1, hidden), jnp.float32) * 0.01)

    w2_raw = jax.random.normal(k3, (hidden, 2 * d_latent), jnp.float32) * s2
    b2_raw = jax.random.normal(k4, (1, 2 * d_latent), jnp.float32) * 0.01
    w2 = (jnp.zeros((H_p, 2 * C_p), jnp.float32)
          .at[:hidden, :d_latent].set(w2_raw[:, :d_latent])            # eps half
          .at[:hidden, C_p:C_p + d_latent].set(w2_raw[:, d_latent:]))  # var half
    b2 = (jnp.zeros((1, 2 * C_p), jnp.float32)
          .at[:, :d_latent].set(b2_raw[:, :d_latent])
          .at[:, C_p:C_p + d_latent].set(b2_raw[:, d_latent:]))

    return {
        "w1": w1.astype(jnp.bfloat16),
        "b1": b1,
        "w2": w2.astype(jnp.bfloat16),
        "b2": b2,
    }


if __name__ == "__main__":
    # Small shapes that also exercise the padding path (96 -> 128, 192 -> 256, 12 -> 16).
    B, N_CTX, D_LATENT, HIDDEN = 2, 12, 96, 192
    C_P = _round_up(D_LATENT, 128)

    key = jax.random.PRNGKey(0)
    kx, kt, kp = jax.random.split(key, 3)

    x = jax.random.normal(kx, (B, N_CTX * D_LATENT), jnp.float32)
    t = jax.random.uniform(kt, (B,), jnp.float32, minval=0.0, maxval=1000.0)
    params = init_params(kp, D_LATENT, HIDDEN)

    out = split_vector_diffusion_forward(x, t, params, n_ctx=N_CTX, d_latent=D_LATENT)
    out = jax.block_until_ready(out)
    assert out.shape == (B, 2 * N_CTX * D_LATENT), out.shape

    # Pure-JAX reference mirroring the kernel's dtype flow (bf16 operands, f32 acc).
    def ref_forward(x, t, params):
        h = x.reshape(B, N_CTX, D_LATENT)
        temb = timestep_embedding(t, D_LATENT)[:, None, :]
        w1 = params["w1"][:D_LATENT, :HIDDEN]
        b1 = params["b1"][:, :HIDDEN]
        w2e = params["w2"][:HIDDEN, :D_LATENT]
        w2v = params["w2"][:HIDDEN, C_P:C_P + D_LATENT]
        b2e = params["b2"][:, :D_LATENT]
        b2v = params["b2"][:, C_P:C_P + D_LATENT]
        h_bf = h.astype(jnp.bfloat16)
        xin = (h_bf.astype(jnp.float32) + temb).astype(jnp.bfloat16)
        z = jnp.einsum("btc,ch->bth", xin, w1,
                       preferred_element_type=jnp.float32) + b1
        z = z * jax.nn.sigmoid(z)
        zb = z.astype(jnp.bfloat16)
        eps = jnp.einsum("bth,hc->btc", zb, w2e,
                         preferred_element_type=jnp.float32) + b2e
        var = jnp.einsum("bth,hc->btc", zb, w2v,
                         preferred_element_type=jnp.float32) + b2v
        return jnp.concatenate([eps.reshape(B, -1), var.reshape(B, -1)], axis=1)

    ref = jax.block_until_ready(ref_forward(x, t, params))
    assert jnp.allclose(out, ref, atol=1e-2, rtol=1e-2), (
        float(jnp.max(jnp.abs(out - ref))))

    print("KERNEL_OK")
</pallas_src>

<mosaic_0001>
module attributes {stable_mosaic.version = 11 : i64} {
  func.func @_denoiser_kernel(%arg0: i32, %arg1: i32, %arg2: memref<1x16x128xbf16, #tpu.memory_space<vmem>>, %arg3: memref<1x1x128xf32, #tpu.memory_space<vmem>>, %arg4: memref<128x256xbf16, #tpu.memory_space<vmem>>, %arg5: memref<1x256xf32, #tpu.memory_space<vmem>>, %arg6: memref<256x256xbf16, #tpu.memory_space<vmem>>, %arg7: memref<1x256xf32, #tpu.memory_space<vmem>>, %arg8: memref<1x16x128xf32, #tpu.memory_space<vmem>>, %arg9: memref<1x16x128xf32, #tpu.memory_space<vmem>>) attributes {dimension_semantics = [#tpu.dimension_semantics<parallel>, #tpu.dimension_semantics<parallel>], iteration_bounds = array<i64: 2, 1>, scalar_prefetch = 0 : i64, scratch_operands = 0 : i64, tpu.core_type = #tpu.core_type<tc>, window_params = [{transform_indices = @transform_0, window_bounds = array<i64: 1, 16, 128>}, {transform_indices = @transform_1, window_bounds = array<i64: 1, 1, 128>}, {pipeline_mode = #tpu.pipeline_mode<synchronous>, transform_indices = @transform_2, window_bounds = array<i64: 128, 256>}, {pipeline_mode = #tpu.pipeline_mode<synchronous>, transform_indices = @transform_3, window_bounds = array<i64: 1, 256>}, {pipeline_mode = #tpu.pipeline_mode<synchronous>, transform_indices = @transform_4, window_bounds = array<i64: 256, 256>}, {pipeline_mode = #tpu.pipeline_mode<synchronous>, transform_indices = @transform_5, window_bounds = array<i64: 1, 256>}, {transform_indices = @transform_6, window_bounds = array<i64: 1, 16, 128>}, {transform_indices = @transform_7, window_bounds = array<i64: 1, 16, 128>}]} {
    %c0 = arith.constant 0 : index
    %c0_0 = arith.constant 0 : index
    %c0_1 = arith.constant 0 : index
    %0 = vector.load %arg2[%c0, %c0_0, %c0_1] : memref<1x16x128xbf16, #tpu.memory_space<vmem>>, vector<1x16x128xbf16>
    %1 = vector.shape_cast %0 : vector<1x16x128xbf16> to vector<16x128xbf16>
    %2 = arith.extf %1 : vector<16x128xbf16> to vector<16x128xf32>
    %c0_2 = arith.constant 0 : index
    %c0_3 = arith.constant 0 : index
    %c0_4 = arith.constant 0 : index
    %3 = vector.load %arg3[%c0_2, %c0_3, %c0_4] : memref<1x1x128xf32, #tpu.memory_space<vmem>>, vector<1x1x128xf32>
    %4 = vector.shape_cast %3 : vector<1x1x128xf32> to vector<1x128xf32>
    %5 = vector.broadcast %4 : vector<1x128xf32> to vector<16x128xf32>
    %6 = arith.addf %2, %5 : vector<16x128xf32>
    %7 = arith.truncf %6 : vector<16x128xf32> to vector<16x128xbf16>
    %c0_5 = arith.constant 0 : index
    %c0_6 = arith.constant 0 : index
    %8 = vector.load %arg4[%c0_5, %c0_6] : memref<128x256xbf16, #tpu.memory_space<vmem>>, vector<128x256xbf16>
    %cst = arith.constant dense<0.000000e+00> : vector<16x256xf32>
    %9 = tpu.matmul %7, %8, %cst {dimension_numbers = #tpu.dot_dimension_numbers<[1], [0], [0], [1], [0, 0, 1, 1], [], []>} : vector<16x128xbf16>, vector<128x256xbf16>, vector<16x256xf32> -> vector<16x256xf32>
    %c0_7 = arith.constant 0 : index
    %c0_8 = arith.constant 0 : index
    %10 = vector.load %arg5[%c0_7, %c0_8] : memref<1x256xf32, #tpu.memory_space<vmem>>, vector<1x256xf32>
    %11 = vector.broadcast %10 : vector<1x256xf32> to vector<16x256xf32>
    %12 = arith.addf %9, %11 : vector<16x256xf32>
    %13 = arith.negf %12 : vector<16x256xf32>
    %14 = math.exp %13 : vector<16x256xf32>
    %cst_9 = arith.constant 1.000000e+00 : f32
    %15 = vector.broadcast %cst_9 : f32 to vector<16x256xf32>
    %16 = arith.addf %15, %14 : vector<16x256xf32>
    %17 = arith.divf %15, %16 : vector<16x256xf32>
    %18 = arith.mulf %12, %17 : vector<16x256xf32>
    %19 = arith.truncf %18 : vector<16x256xf32> to vector<16x256xbf16>
    %c0_10 = arith.constant 0 : index
    %c0_11 = arith.constant 0 : index
    %20 = vector.load %arg6[%c0_10, %c0_11] : memref<256x256xbf16, #tpu.memory_space<vmem>>, vector<256x256xbf16>
    %cst_12 = arith.constant dense<0.000000e+00> : vector<16x256xf32>
    %21 = tpu.matmul %19, %20, %cst_12 {dimension_numbers = #tpu.dot_dimension_numbers<[1], [0], [0], [1], [0, 0, 1, 1], [], []>} : vector<16x256xbf16>, vector<256x256xbf16>, vector<16x256xf32> -> vector<16x256xf32>
    %c0_13 = arith.constant 0 : index
    %c0_14 = arith.constant 0 : index
    %22 = vector.load %arg7[%c0_13, %c0_14] : memref<1x256xf32, #tpu.memory_space<vmem>>, vector<1x256xf32>
    %23 = vector.broadcast %22 : vector<1x256xf32> to vector<16x256xf32>
    %24 = arith.addf %21, %23 : vector<16x256xf32>
    %25 = vector.extract_strided_slice %24 {offsets = [0, 0], sizes = [16, 128], strides = [1, 1]} : vector<16x256xf32> to vector<16x128xf32>
    %c0_15 = arith.constant 0 : index
    %c0_16 = arith.constant 0 : index
    %c0_17 = arith.constant 0 : index
    %26 = vector.load %arg8[%c0_15, %c0_16, %c0_17] : memref<1x16x128xf32, #tpu.memory_space<vmem>>, vector<1x16x128xf32>
    %27 = vector.shape_cast %26 : vector<1x16x128xf32> to vector<16x128xf32>
    %28 = vector.shape_cast %25 : vector<16x128xf32> to vector<1x16x128xf32>
    tpu.vector_store %arg8[%c0_15, %c0_16, %c0_17], %28 {strides = array<i32>} : memref<1x16x128xf32, #tpu.memory_space<vmem>>, vector<1x16x128xf32>,
    %29 = vector.extract_strided_slice %24 {offsets = [0, 128], sizes = [16, 128], strides = [1, 1]} : vector<16x256xf32> to vector<16x128xf32>
    %c0_18 = arith.constant 0 : index
    %c0_19 = arith.constant 0 : index
    %c0_20 = arith.constant 0 : index
    %30 = vector.load %arg9[%c0_18, %c0_19, %c0_20] : memref<1x16x128xf32, #tpu.memory_space<vmem>>, vector<1x16x128xf32>
    %31 = vector.shape_cast %30 : vector<1x16x128xf32> to vector<16x128xf32>
    %32 = vector.shape_cast %29 : vector<16x128xf32> to vector<1x16x128xf32>
    tpu.vector_store %arg9[%c0_18, %c0_19, %c0_20], %32 {strides = array<i32>} : memref<1x16x128xf32, #tpu.memory_space<vmem>>, vector<1x16x128xf32>,
    return
  }
  func.func @transform_0(%arg0: i32, %arg1: i32) -> (i32, i32, i32) {
    %c0_i32 = arith.constant 0 : i32
    %c0_i32_0 = arith.constant 0 : i32
    return %arg0, %arg1, %c0_i32 : i32, i32, i32
  }
  func.func @transform_1(%arg0: i32, %arg1: i32) -> (i32, i32, i32) {
    %c0_i32 = arith.constant 0 : i32
    %c0_i32_0 = arith.constant 0 : i32
    %c0_i32_1 = arith.constant 0 : i32
    return %arg0, %c0_i32, %c0_i32_0 : i32, i32, i32
  }
  func.func @transform_2(%arg0: i32, %arg1: i32) -> (i32, i32) {
    %c0_i32 = arith.constant 0 : i32
    %c0_i32_0 = arith.constant 0 : i32
    %c0_i32_1 = arith.constant 0 : i32
    return %c0_i32, %c0_i32_0 : i32, i32
  }
  func.func @transform_3(%arg0: i32, %arg1: i32) -> (i32, i32) {
    %c0_i32 = arith.constant 0 : i32
    %c0_i32_0 = arith.constant 0 : i32
    %c0_i32_1 = arith.constant 0 : i32
    return %c0_i32, %c0_i32_0 : i32, i32
  }
  func.func @transform_4(%arg0: i32, %arg1: i32) -> (i32, i32) {
    %c0_i32 = arith.constant 0 : i32
    %c0_i32_0 = arith.constant 0 : i32
    %c0_i32_1 = arith.constant 0 : i32
    return %c0_i32, %c0_i32_0 : i32, i32
  }
  func.func @transform_5(%arg0: i32, %arg1: i32) -> (i32, i32) {
    %c0_i32 = arith.constant 0 : i32
    %c0_i32_0 = arith.constant 0 : i32
    %c0_i32_1 = arith.constant 0 : i32
    return %c0_i32, %c0_i32_0 : i32, i32
  }
  func.func @transform_6(%arg0: i32, %arg1: i32) -> (i32, i32, i32) {
    %c0_i32 = arith.constant 0 : i32
    %c0_i32_0 = arith.constant 0 : i32
    return %arg0, %arg1, %c0_i32 : i32, i32, i32
  }
  func.func @transform_7(%arg0: i32, %arg1: i32) -> (i32, i32, i32) {
    %c0_i32 = arith.constant 0 : i32
    %c0_i32_0 = arith.constant 0 : i32
    return %arg0, %arg1, %c0_i32 : i32, i32, i32
  }
}

</mosaic_0001>

<llo_original>
// kernel: split_vector_diffusion_forward.1
$region0: #{split_vector_diffusion_forward.1}
  #allocation0 [shape = 'u32[]', space=smem, size = 0x4, offset = 0x4, fixed_abs, tag = 'smem constant byte address 0x4 - core index']
  #allocation1 [shape = 'u32[144,128]{1,0:T(1,128)}', space=vmem, size = 0x12000, scoped, tag = 'internal scratch']
  %s0 = inlined_call_operand.vmem [shape: bf16[2,16,128], index: 0, kind: input, shape index: {}]
  %s1 = inlined_call_operand.vmem [shape: f32[2,1,128], index: 1, kind: input, shape index: {}]
  %s2 = inlined_call_operand.hbm [shape: bf16[128,256], index: 2, kind: input, shape index: {}]
  %s3 = inlined_call_operand.vmem [shape: f32[1,256], index: 3, kind: input, shape index: {}]
  %s4 = inlined_call_operand.hbm [shape: bf16[256,256], index: 4, kind: input, shape index: {}]
  %s5 = inlined_call_operand.vmem [shape: f32[1,256], index: 5, kind: input, shape index: {}]
  %s6 = inlined_call_operand.vmem [shape: f32[2,16,128], index: 6, kind: output, shape index: {0}]
  %s7 = inlined_call_operand.vmem [shape: f32[2,16,128], index: 7, kind: output, shape index: {1}]
  %8 = xla_tuple %s6, %s7
  %s9 = sld [smem:[#allocation0]]
  $region73: #{split_vector_diffusion_forward.1} parent=0
    _
  %s11 = ssub.s32 1, %s9
  %s12 = scalar_select 0, %s11, %s9
  $region1: #{split_vector_diffusion_forward.1} parent=0
    #allocation2 [shape = 'u8[65536]{0}', space=vmem, size = 0x10000, scoped, tag = 'input window, operand 2, single buffered']
    #allocation3 [shape = 's32[2]{0}', space=sflag, size = 0x8, scoped, tag = 'scoped memory for split_vector_diffusion_forward.1']
    #allocation4 [shape = 'u8[131072]{0}', space=vmem, size = 0x20000, scoped, tag = 'input window, operand 4, single buffered']
    #allocation5 [shape = 's32[1]{0}', space=sflag, size = 0x4, scoped, tag = 'scoped memory for split_vector_diffusion_forward.1']
    %13 = vsyncpa [#allocation3], 0
    %14 = vsyncpa [#allocation5], 0
    loop: start=0, step=1, limit=4
    $region2: #{split_vector_diffusion_forward.1} parent=1 // loop_pre_header
      _
    $region3: #{split_vector_diffusion_forward.1} parent=1 // loop_header
      %s16 = sphi 0, %s20
      %p17 = scmp.ge.s32.totalorder %s16, 4
      %s23 = sphi 0, %s35
      %s24 = sphi 0, %s31
      %s25 = sphi 0, %s23
      %s26 = sphi 0, %s24
      %s27 = sphi 0, %s25
      %s28 = sphi 0, %s26
      %s40 = sphi 0, %s42
      %s43 = sphi 0, %s40
      %s44 = sphi 0, %s43
      %s60 = sphi 0, %s44
      %s66 = sphi 0, %s68
      %s69 = sphi 0, %s66
      %s70 = sphi 0, %s69
      %s86 = sphi 0, %s70
      %s90 = sphi 0, %s90
      %s92 = sphi 0, %s90
      %s93 = sphi 0, %s92
      %s107 = sphi 0, %s93
      %s111 = sphi 0, %s111
      %s113 = sphi 0, %s111
      %s114 = sphi 0, %s113
      %s128 = sphi 0, %s114
      %s132 = sphi 0, %s132
      %s134 = sphi 0, %s132
      %s135 = sphi 0, %s134
      %s149 = sphi 0, %s135
      %s153 = sphi 0, %s153
      %s155 = sphi 0, %s153
      %s156 = sphi 0, %s155
      %s170 = sphi 0, %s156
      %s178 = sphi 0, %s180
      %s181 = sphi 0, %s178
      %s182 = sphi 0, %s181
      %s198 = sphi 0, %s182
      %s206 = sphi 0, %s208
      %s209 = sphi 0, %s206
      %s210 = sphi 0, %s209
      %s226 = sphi 0, %s210
    $region4: #{split_vector_diffusion_forward.1} parent=1 // loop_header_branch
      %19 = sbr.rel (%p17) target = $region8
    $region5: #{split_vector_diffusion_forward.1} parent=1 // loop_body
      %s21 = ssub.s32 %s16, 1
      %s22 = ssub.s32 %s16, 2
      %s29 = sadd.s32 1, %s24
      %p30 = scmp.ge.s32.totalorder %s29, 1
      %s31 = scalar_select %p30, 0, %s29
      %s32 = sadd.s32 1, %s23
      %s33 = scalar_select %p30, %s32, %s23
      %p34 = scmp.ge.s32.totalorder %s33, 2
      %s35 = scalar_select %p34, 0, %s33
      %s36 = ssub.s32 %s23, %s35
      %s37 = ssub.s32 %s24, %s31
      %s38 = sor.u32 %s36, %s37
      %p39 = scmp.eq.s32.totalorder %s38, 0
      %s41 = sadd.s32 %s40, 1
      %s42 = scalar_select %p39, %s40, %s41
      %p45 = pneg %p39
      %p46 = scmp.eq.s32.totalorder %s16, 1
      %p47 = por %p45, %p46
      %p48 = scmp.ne.s32.totalorder %s40, %s43
      %p49 = scmp.eq.s32.totalorder %s16, 0
      %p50 = por %p48, %p49
      %p51 = scmp.ne.s32.totalorder %s40, %s43
      %p52 = scmp.eq.s32.totalorder %s21, 1
      %p53 = por %p51, %p52
      %p54 = scmp.ne.s32.totalorder %s43, %s44
      %p55 = scmp.eq.s32.totalorder %s21, 0
      %p56 = por %p54, %p55
      %p57 = scmp.ne.s32.totalorder %s43, %s44
      %p58 = scmp.eq.s32.totalorder %s22, 1
      %p59 = por %p57, %p58
      %p61 = scmp.ne.s32.totalorder %s44, %s60
      %p62 = scmp.eq.s32.totalorder %s22, 0
      %p63 = por %p61, %p62
      %s64 = ssub.s32 %s23, %s35
      %p65 = scmp.eq.s32.totalorder %s64, 0
      %s67 = sadd.s32 %s66, 1
      %s68 = scalar_select %p65, %s66, %s67
      %p71 = pneg %p65
      %p72 = scmp.eq.s32.totalorder %s16, 1
      %p73 = por %p71, %p72
      %p74 = scmp.ne.s32.totalorder %s66, %s69
      %p75 = scmp.eq.s32.totalorder %s16, 0
      %p76 = por %p74, %p75
      %p77 = scmp.ne.s32.totalorder %s66, %s69
      %p78 = scmp.eq.s32.totalorder %s21, 1
      %p79 = por %p77, %p78
      %p80 = scmp.ne.s32.totalorder %s69, %s70
      %p81 = scmp.eq.s32.totalorder %s21, 0
      %p82 = por %p80, %p81
      %p83 = scmp.ne.s32.totalorder %s69, %s70
      %p84 = scmp.eq.s32.totalorder %s22, 1
      %p85 = por %p83, %p84
      %p87 = scmp.ne.s32.totalorder %s70, %s86
      %p88 = scmp.eq.s32.totalorder %s22, 0
      %p89 = por %p87, %p88
      %s91 = sadd.s32 %s90, 1
      %p94 = scmp.eq.s32.totalorder %s16, 1
      %p95 = scmp.ne.s32.totalorder %s90, %s92
      %p96 = scmp.eq.s32.totalorder %s16, 0
      %p97 = por %p95, %p96
      %p98 = scmp.ne.s32.totalorder %s90, %s92
      %p99 = scmp.eq.s32.totalorder %s21, 1
      %p100 = por %p98, %p99
      %p101 = scmp.ne.s32.totalorder %s92, %s93
      %p102 = scmp.eq.s32.totalorder %s21, 0
      %p103 = por %p101, %p102
      %p104 = scmp.ne.s32.totalorder %s92, %s93
      %p105 = scmp.eq.s32.totalorder %s22, 1
      %p106 = por %p104, %p105
      %p108 = scmp.ne.s32.totalorder %s93, %s107
      %p109 = scmp.eq.s32.totalorder %s22, 0
      %p110 = por %p108, %p109
      %s112 = sadd.s32 %s111, 1
      %p115 = scmp.eq.s32.totalorder %s16, 1
      %p116 = scmp.ne.s32.totalorder %s111, %s113
      %p117 = scmp.eq.s32.totalorder %s16, 0
      %p118 = por %p116, %p117
      %p119 = scmp.ne.s32.totalorder %s111, %s113
      %p120 = scmp.eq.s32.totalorder %s21, 1
      %p121 = por %p119, %p120
      %p122 = scmp.ne.s32.totalorder %s113, %s114
      %p123 = scmp.eq.s32.totalorder %s21, 0
      %p124 = por %p122, %p123
      %p125 = scmp.ne.s32.totalorder %s113, %s114
      %p126 = scmp.eq.s32.totalorder %s22, 1
      %p127 = por %p125, %p126
      %p129 = scmp.ne.s32.totalorder %s114, %s128
      %p130 = scmp.eq.s32.totalorder %s22, 0
      %p131 = por %p129, %p130
      %s133 = sadd.s32 %s132, 1
      %p136 = scmp.eq.s32.totalorder %s16, 1
      %p137 = scmp.ne.s32.totalorder %s132, %s134
      %p138 = scmp.eq.s32.totalorder %s16, 0
      %p139 = por %p137, %p138
      %p140 = scmp.ne.s32.totalorder %s132, %s134
      %p141 = scmp.eq.s32.totalorder %s21, 1
      %p142 = por %p140, %p141
      %p143 = scmp.ne.s32.totalorder %s134, %s135
      %p144 = scmp.eq.s32.totalorder %s21, 0
      %p145 = por %p143, %p144
      %p146 = scmp.ne.s32.totalorder %s134, %s135
      %p147 = scmp.eq.s32.totalorder %s22, 1
      %p148 = por %p146, %p147
      %p150 = scmp.ne.s32.totalorder %s135, %s149
      %p151 = scmp.eq.s32.totalorder %s22, 0
      %p152 = por %p150, %p151
      %s154 = sadd.s32 %s153, 1
      %p157 = scmp.eq.s32.totalorder %s16, 1
      %p158 = scmp.ne.s32.totalorder %s153, %s155
      %p159 = scmp.eq.s32.totalorder %s16, 0
      %p160 = por %p158, %p159
      %p161 = scmp.ne.s32.totalorder %s153, %s155
      %p162 = scmp.eq.s32.totalorder %s21, 1
      %p163 = por %p161, %p162
      %p164 = scmp.ne.s32.totalorder %s155, %s156
      %p165 = scmp.eq.s32.totalorder %s21, 0
      %p166 = por %p164, %p165
      %p167 = scmp.ne.s32.totalorder %s155, %s156
      %p168 = scmp.eq.s32.totalorder %s22, 1
      %p169 = por %p167, %p168
      %p171 = scmp.ne.s32.totalorder %s156, %s170
      %p172 = scmp.eq.s32.totalorder %s22, 0
      %p173 = por %p171, %p172
      %s174 = ssub.s32 %s23, %s35
      %s175 = ssub.s32 %s24, %s31
      %s176 = sor.u32 %s174, %s175
      %p177 = scmp.eq.s32.totalorder %s176, 0
      %s179 = sadd.s32 %s178, 1
      %s180 = scalar_select %p177, %s178, %s179
      %p183 = pneg %p177
      %p184 = scmp.eq.s32.totalorder %s16, 1
      %p185 = por %p183, %p184
      %p186 = scmp.ne.s32.totalorder %s178, %s181
      %p187 = scmp.eq.s32.totalorder %s16, 0
      %p188 = por %p186, %p187
      %p189 = scmp.ne.s32.totalorder %s178, %s181
      %p190 = scmp.eq.s32.totalorder %s21, 1
      %p191 = por %p189, %p190
      %p192 = scmp.ne.s32.totalorder %s181, %s182
      %p193 = scmp.eq.s32.totalorder %s21, 0
      %p194 = por %p192, %p193
      %p195 = scmp.ne.s32.totalorder %s181, %s182
      %p196 = scmp.eq.s32.totalorder %s22, 1
      %p197 = por %p195, %p196
      %p199 = scmp.ne.s32.totalorder %s182, %s198
      %p200 = scmp.eq.s32.totalorder %s22, 0
      %p201 = por %p199, %p200
      %s202 = ssub.s32 %s23, %s35
      %s203 = ssub.s32 %s24, %s31
      %s204 = sor.u32 %s202, %s203
      %p205 = scmp.eq.s32.totalorder %s204, 0
      %s207 = sadd.s32 %s206, 1
      %s208 = scalar_select %p205, %s206, %s207
      %p211 = pneg %p205
      %p212 = scmp.eq.s32.totalorder %s16, 1
      %p213 = por %p211, %p212
      %p214 = scmp.ne.s32.totalorder %s206, %s209
      %p215 = scmp.eq.s32.totalorder %s16, 0
      %p216 = por %p214, %p215
      %p217 = scmp.ne.s32.totalorder %s206, %s209
      %p218 = scmp.eq.s32.totalorder %s21, 1
      %p219 = por %p217, %p218
      %p220 = scmp.ne.s32.totalorder %s209, %s210
      %p221 = scmp.eq.s32.totalorder %s21, 0
      %p222 = por %p220, %p221
      %p223 = scmp.ne.s32.totalorder %s209, %s210
      %p224 = scmp.eq.s32.totalorder %s22, 1
      %p225 = por %p223, %p224
      %p227 = scmp.ne.s32.totalorder %s210, %s226
      %p228 = scmp.eq.s32.totalorder %s22, 0
      %p229 = por %p227, %p228
      %p230 = scmp.le.s32.totalorder 1, %s16
      %p231 = scmp.lt.s32.totalorder %s16, 3
      %p232 = pnand %p230, %p231
      %p233 = pneg %p232
      // Predicated region
      $region9: #{split_vector_diffusion_forward.1} parent=5 // pred_check
        _
      $region10: #{split_vector_diffusion_forward.1} parent=5 // pred_check_branch
        %235 = sbr.rel (%p232) target = $region12
      $region11: #{split_vector_diffusion_forward.1} parent=5 // pred_region
        %s236 = ssub.s32 %s16, 1
        // Predicated region
        $region13: #{split_vector_diffusion_forward.1} parent=11 // pred_check
          %p237 = pneg %p103
        $region14: #{split_vector_diffusion_forward.1} parent=11 // pred_check_branch
          %239 = sbr.rel (%p237) target = $region16
        $region15: #{split_vector_diffusion_forward.1} parent=11 // pred_region
          %s241 = ssub.s32 2048, 2048
          %242 = vsyncadd [#allocation3], %s241
          %s243 = sshll.u32 [#allocation2], 4
          %s244 = int_to_ptr.vmem [resolvable:$true] %s243
          %249 = dma.hbm_to_vmem [thread:$0]  %s2, 2048, %s244, [#allocation3], 128, 128, 8
        $region16: #{split_vector_diffusion_forward.1} parent=11 // pred_fallthru
          _
        // Predicated region
        $region17: #{split_vector_diffusion_forward.1} parent=11 // pred_check
          %p250 = pneg %p124
        $region18: #{split_vector_diffusion_forward.1} parent=11 // pred_check_branch
          %252 = sbr.rel (%p250) target = $region20
        $region19: #{split_vector_diffusion_forward.1} parent=11 // pred_region
          _
        $region20: #{split_vector_diffusion_forward.1} parent=11 // pred_fallthru
          _
        // Predicated region
        $region21: #{split_vector_diffusion_forward.1} parent=11 // pred_check
          %p253 = pneg %p145
        $region22: #{split_vector_diffusion_forward.1} parent=11 // pred_check_branch
          %255 = sbr.rel (%p253) target = $region24
        $region23: #{split_vector_diffusion_forward.1} parent=11 // pred_region
          %s257 = ssub.s32 4096, 4096
          %258 = vsyncadd [#allocation5], %s257
          %s259 = sshll.u32 [#allocation4], 4
          %s260 = int_to_ptr.vmem [resolvable:$true] %s259
          %265 = dma.hbm_to_vmem [thread:$0]  %s4, 4096, %s260, [#allocation5], 128, 128, 8
        $region24: #{split_vector_diffusion_forward.1} parent=11 // pred_fallthru
          _
        // Predicated region
        $region25: #{split_vector_diffusion_forward.1} parent=11 // pred_check
          %p266 = pneg %p166
        $region26: #{split_vector_diffusion_forward.1} parent=11 // pred_check_branch
          %268 = sbr.rel (%p266) target = $region28
        $region27: #{split_vector_diffusion_forward.1} parent=11 // pred_region
          _
        $region28: #{split_vector_diffusion_forward.1} parent=11 // pred_fallthru
          _
      $region12: #{split_vector_diffusion_forward.1} parent=5 // pred_fallthru
        _
      %p269 = scmp.lt.s32.totalorder %s16, 2
      // Predicated region
      $region29: #{split_vector_diffusion_forward.1} parent=5 // pred_check
        %p270 = pneg %p269
      $region30: #{split_vector_diffusion_forward.1} parent=5 // pred_check_branch
        %272 = sbr.rel (%p270) target = $region32
      $region31: #{split_vector_diffusion_forward.1} parent=5 // pred_region
        // Predicated region
        $region33: #{split_vector_diffusion_forward.1} parent=31 // pred_check
          %p273 = pneg %p50
        $region34: #{split_vector_diffusion_forward.1} parent=31 // pred_check_branch
          %275 = sbr.rel (%p273) target = $region36
        $region35: #{split_vector_diffusion_forward.1} parent=31 // pred_region
          %s276 = smul.u32 2, %s24
          %p277 = scmp.lt.s32.totalorder %s23, 1
          %s278 = scalar_select %p277, %s23, 1
          %p279 = scmp.lt.s32.totalorder %s276, 1
          %s280 = scalar_select %p279, %s276, 1
          %s281 = smul.addr %s278, 2
          %s282 = sadd.s32 %s280, %s281
          %s283 = smul.addr %s282, 4
          %s284 = scalar_lea.vmem %s0, %s283
          %s285 = smul.u32 2, %s24
        $region36: #{split_vector_diffusion_forward.1} parent=31 // pred_fallthru
          _
        // Predicated region
        $region37: #{split_vector_diffusion_forward.1} parent=31 // pred_check
          %p286 = pneg %p76
        $region38: #{split_vector_diffusion_forward.1} parent=31 // pred_check_branch
          %288 = sbr.rel (%p286) target = $region40
        $region39: #{split_vector_diffusion_forward.1} parent=31 // pred_region
          %p289 = scmp.lt.s32.totalorder %s23, 1
          %s290 = scalar_select %p289, %s23, 1
          %s291 = scalar_lea.vmem %s1, %s290
        $region40: #{split_vector_diffusion_forward.1} parent=31 // pred_fallthru
          _
      $region32: #{split_vector_diffusion_forward.1} parent=5 // pred_fallthru
        _
      %p292 = scmp.le.s32.totalorder 1, %s16
      %p293 = scmp.lt.s32.totalorder %s16, 3
      %p294 = pnand %p292, %p293
      %p295 = pneg %p294
      // Predicated region
      $region41: #{split_vector_diffusion_forward.1} parent=5 // pred_check
        _
      $region42: #{split_vector_diffusion_forward.1} parent=5 // pred_check_branch
        %297 = sbr.rel (%p294) target = $region44
      $region43: #{split_vector_diffusion_forward.1} parent=5 // pred_region
        %s298 = ssub.s32 %s16, 1
        // Predicated region
        $region45: #{split_vector_diffusion_forward.1} parent=43 // pred_check
          %p299 = pneg %p103
        $region46: #{split_vector_diffusion_forward.1} parent=43 // pred_check_branch
          %301 = sbr.rel (%p299) target = $region48
        $region47: #{split_vector_diffusion_forward.1} parent=43 // pred_region
          %302 = dma.done [#allocation3], 2048
        $region48: #{split_vector_diffusion_forward.1} parent=43 // pred_fallthru
          _
        // Predicated region
        $region49: #{split_vector_diffusion_forward.1} parent=43 // pred_check
          %p303 = pneg %p145
        $region50: #{split_vector_diffusion_forward.1} parent=43 // pred_check_branch
          %305 = sbr.rel (%p303) target = $region52
        $region51: #{split_vector_diffusion_forward.1} parent=43 // pred_region
          %306 = dma.done [#allocation5], 4096
        $region52: #{split_vector_diffusion_forward.1} parent=43 // pred_fallthru
          _
        %s307 = smul.u32 2, %s26
        %p308 = scmp.lt.s32.totalorder %s25, 1
        %s309 = scalar_select %p308, %s25, 1
        %p310 = scmp.lt.s32.totalorder %s307, 1
        %s311 = scalar_select %p310, %s307, 1
        %s312 = smul.addr %s309, 2
        %s313 = sadd.s32 %s311, %s312
        %s314 = smul.addr %s313, 4
        %s315 = scalar_lea.vmem %s0, %s314
        %p316 = pneg %p56
        %p317 = pneg %p53
        %p318 = scmp.lt.s32.totalorder %s25, 1
        %s319 = scalar_select %p318, %s25, 1
        %s320 = scalar_lea.vmem %s1, %s319
        %p321 = pneg %p82
        %p322 = pneg %p79
        %p323 = pneg %p103
        %p324 = pneg %p100
        %p325 = pneg %p124
        %p326 = pneg %p121
        %p327 = pneg %p145
        %p328 = pneg %p142
        %p329 = pneg %p166
        %p330 = pneg %p163
        %p331 = pneg %p194
        %p332 = pneg %p191
        %s333 = smul.u32 2, %s26
        %p334 = scmp.lt.s32.totalorder %s25, 1
        %s335 = scalar_select %p334, %s25, 1
        %p336 = scmp.lt.s32.totalorder %s333, 1
        %s337 = scalar_select %p336, %s333, 1
        %s338 = smul.addr %s335, 2
        %s339 = sadd.s32 %s337, %s338
        %s340 = smul.addr %s339, 8
        %s341 = scalar_lea.vmem %s6, %s340
        %p342 = pneg %p222
        %p343 = pneg %p219
        %s344 = smul.u32 2, %s26
        %p345 = scmp.lt.s32.totalorder %s25, 1
        %s346 = scalar_select %p345, %s25, 1
        %p347 = scmp.lt.s32.totalorder %s344, 1
        %s348 = scalar_select %p347, %s344, 1
        %s349 = smul.addr %s346, 2
        %s350 = sadd.s32 %s348, %s349
        %s351 = smul.addr %s350, 8
        %s352 = scalar_lea.vmem %s7, %s351
        %s353 = smul.u32 2, %s26
        %p354 = scmp.lt.s32.totalorder %s25, 1
        %s355 = scalar_select %p354, %s25, 1
        %p356 = scmp.lt.s32.totalorder %s353, 1
        %s357 = scalar_select %p356, %s353, 1
        %s358 = smul.addr %s355, 2
        %s359 = sadd.s32 %s357, %s358
        %s360 = smul.addr %s359, 4
        %s361 = scalar_lea.vmem %s0, %s360
        %s362 = smul.u32 2, %s26
        %p363 = scmp.lt.s32.totalorder %s25, 1
        %s364 = scalar_select %p363, %s25, 1
        %s365 = scalar_lea.vmem %s1, %s364
        %s366 = smul.u32 2, %s26
        %p367 = scmp.lt.s32.totalorder %s25, 1
        %s368 = scalar_select %p367, %s25, 1
        %p369 = scmp.lt.s32.totalorder %s366, 1
        %s370 = scalar_select %p369, %s366, 1
        %s371 = smul.addr %s368, 2
        %s372 = sadd.s32 %s370, %s371
        %s373 = smul.addr %s372, 8
        %s374 = scalar_lea.vmem %s6, %s373
        %s375 = smul.u32 2, %s26
        %s376 = smul.u32 2, %s26
        %p377 = scmp.lt.s32.totalorder %s25, 1
        %s378 = scalar_select %p377, %s25, 1
        %p379 = scmp.lt.s32.totalorder %s376, 1
        %s380 = scalar_select %p379, %s376, 1
        %s381 = smul.addr %s378, 2
        %s382 = sadd.s32 %s380, %s381
        %s383 = smul.addr %s382, 8
        %s384 = scalar_lea.vmem %s7, %s383
        %s385 = smul.u32 2, %s26
        %v387 = vld [vmem:[%s361] sm:$0xf]
        %v388 = vld [vmem:[%s361 + $0x4] sm:$0xf]
        %v389 = vunpack.c.l.bf16 %v387
        %v390 = vunpack.c.l.bf16 %v388
        %v391 = vld [vmem:[%s365] sm:$0x1]
        %v393 = vlaneseq
        %v394 = vshrl.u32 %v393, 7
        %v395 = vsub.s32 0, %v394
        %v396 = vrot.slane %v391, %v395
        %v398 = vadd.f32 %v389, %v396
        %v399 = vadd.f32 %v390, %v396
        %v400 = vpack.c.bf16 %v399, %v398
        %v401 = vld [vmem:[#allocation2] sm:$0xff]
        %v402 = vld [vmem:[#allocation2 + $0x8] sm:$0xff]
        %v403 = vld [vmem:[#allocation2 + $0x10] sm:$0xff]
        %v404 = vld [vmem:[#allocation2 + $0x18] sm:$0xff]
        %v405 = vld [vmem:[#allocation2 + $0x20] sm:$0xff]
        %v406 = vld [vmem:[#allocation2 + $0x28] sm:$0xff]
        %v407 = vld [vmem:[#allocation2 + $0x30] sm:$0xff]
        %v408 = vld [vmem:[#allocation2 + $0x38] sm:$0xff]
        %v409 = vld [vmem:[#allocation2 + $0x40] sm:$0xff]
        %v410 = vld [vmem:[#allocation2 + $0x48] sm:$0xff]
        %v411 = vld [vmem:[#allocation2 + $0x50] sm:$0xff]
        %v412 = vld [vmem:[#allocation2 + $0x58] sm:$0xff]
        %v413 = vld [vmem:[#allocation2 + $0x60] sm:$0xff]
        %v414 = vld [vmem:[#allocation2 + $0x68] sm:$0xff]
        %v415 = vld [vmem:[#allocation2 + $0x70] sm:$0xff]
        %v416 = vld [vmem:[#allocation2 + $0x78] sm:$0xff]
        %v417 = vld [vmem:[%s3] sm:$0x3]
        %v419 = vlaneseq
        %v420 = vshrl.u32 %v419, 7
        %v421 = vsub.s32 0, %v420
        %v422 = vrot.slane %v417, %v421
        %v423 = vlaneseq
        %v424 = vshrl.u32 %v423, 7
        %v425 = vsub.s32 1, %v424
        %v426 = vrot.slane %v417, %v425
        %v445 = vunpack.c.l.b16 %v401
        %v446 = vunpack.c.h.b16 %v401
        %v447 = vunpack.c.l.b16 %v402
        %v448 = vunpack.c.h.b16 %v402
        %v449 = vunpack.c.l.b16 %v403
        %v450 = vunpack.c.h.b16 %v403
        %v451 = vunpack.c.l.b16 %v404
        %v452 = vunpack.c.h.b16 %v404
        %v453 = vunpack.c.l.b16 %v405
        %v454 = vunpack.c.h.b16 %v405
        %v455 = vunpack.c.l.b16 %v406
        %v456 = vunpack.c.h.b16 %v406
        %v457 = vunpack.c.l.b16 %v407
        %v458 = vunpack.c.h.b16 %v407
        %v459 = vunpack.c.l.b16 %v408
        %v460 = vunpack.c.h.b16 %v408
        %v461 = vunpack.c.l.b16 %v409
        %v462 = vunpack.c.h.b16 %v409
        %v463 = vunpack.c.l.b16 %v410
        %v464 = vunpack.c.h.b16 %v410
        %v465 = vunpack.c.l.b16 %v411
        %v466 = vunpack.c.h.b16 %v411
        %v467 = vunpack.c.l.b16 %v412
        %v468 = vunpack.c.h.b16 %v412
        %v469 = vunpack.c.l.b16 %v413
        %v470 = vunpack.c.h.b16 %v413
        %v471 = vunpack.c.l.b16 %v414
        %v472 = vunpack.c.h.b16 %v414
        %v473 = vunpack.c.l.b16 %v415
        %v474 = vunpack.c.h.b16 %v415
        %v475 = vunpack.c.l.b16 %v416
        %v476 = vunpack.c.h.b16 %v416
        %v477 = vpack.c.b16 %v447, %v445
        %v478 = vpack.c.b16 %v448, %v446
        %v479 = vpack.c.b16 %v451, %v449
        %v480 = vpack.c.b16 %v452, %v450
        %v481 = vpack.c.b16 %v455, %v453
        %v482 = vpack.c.b16 %v456, %v454
        %v483 = vpack.c.b16 %v459, %v457
        %v484 = vpack.c.b16 %v460, %v458
        %v485 = vpack.c.b16 %v463, %v461
        %v486 = vpack.c.b16 %v464, %v462
        %v487 = vpack.c.b16 %v467, %v465
        %v488 = vpack.c.b16 %v468, %v466
        %v489 = vpack.c.b16 %v471, %v469
        %v490 = vpack.c.b16 %v472, %v470
        %v491 = vpack.c.b16 %v475, %v473
        %v492 = vpack.c.b16 %v476, %v474
        %509 = vmatprep.subr.bf16.mxu0 %v478
        %510 = vmatpush1.bf16.msra.mxu0 %v477
        %511 = vmatprep.subr.bf16.mxu0 %v480
        %512 = vmatpush1.bf16.msra.mxu0 %v479
        %513 = vmatprep.subr.bf16.mxu0 %v482
        %514 = vmatpush1.bf16.msra.mxu0 %v481
        %515 = vmatprep.subr.bf16.mxu0 %v484
        %516 = vmatpush1.bf16.msra.mxu0 %v483
        %517 = vmatprep.subr.bf16.mxu0 %v486
        %518 = vmatpush1.bf16.msra.mxu0 %v485
        %519 = vmatprep.subr.bf16.mxu0 %v488
        %520 = vmatpush1.bf16.msra.mxu0 %v487
        %521 = vmatprep.subr.bf16.mxu0 %v490
        %522 = vmatpush1.bf16.msra.mxu0 %v489
        %523 = vmatprep.subr.bf16.mxu0 %v492
        %524 = vmatpush1.bf16.msra.mxu0 %v491
        %525 = vmatprep.subr.bf16.mxu0 0
        %526 = vmatpush1.bf16.msra.mxu0 0
        %527 = vmatprep.subr.bf16.mxu0 0
        %528 = vmatpush1.bf16.msra.mxu0 0
        %529 = vmatprep.subr.bf16.mxu0 0
        %530 = vmatpush1.bf16.msra.mxu0 0
        %531 = vmatprep.subr.bf16.mxu0 0
        %532 = vmatpush1.bf16.msra.mxu0 0
        %533 = vmatprep.subr.bf16.mxu0 0
        %534 = vmatpush1.bf16.msra.mxu0 0
        %535 = vmatprep.subr.bf16.mxu0 0
        %536 = vmatpush1.bf16.msra.mxu0 0
        %537 = vmatprep.subr.bf16.mxu0 0
        %538 = vmatpush1.bf16.msra.mxu0 0
        %539 = vmatprep.subr.bf16.mxu0 0
        %540 = vmatpush1.bf16.msra.mxu0 0
        %541 = vmatprep.mubr.bf16.mxu0 0
        %542 = vmatmul.mubr.bf16.gmra.mrb[0].mxu0 %v400
        %v543 = vpop.f32.mrb[0].mxu0
        %v544 = vadd.f32 %v422, %v543
        %v545 = vpop.f32.mrb[0].mxu0
        %v546 = vadd.f32 %v426, %v545
        %v547 = vpop.f32.mrb[0].mxu0
        %v548 = vadd.f32 %v422, %v547
        %v549 = vpop.f32.mrb[0].mxu0
        %v550 = vadd.f32 %v426, %v549
        %551 = vdwg.mxu0
        %v552 = vxor.u32 %v544, 2147483648
        %v553 = vxor.u32 %v546, 2147483648
        %v554 = vxor.u32 %v548, 2147483648
        %v555 = vxor.u32 %v550, 2147483648
        %v556 = vmul.f32 %v552, 1.442695
        %v557 = vpow.pop %v556
        %v558 = vmul.f32 %v553, 1.442695
        %v559 = vpow.pop %v558
        %v560 = vmul.f32 %v554, 1.442695
        %v561 = vpow.pop %v560
        %v562 = vmul.f32 %v555, 1.442695
        %v563 = vpow.pop %v562
        %v564 = vadd.f32 %v557, 1.0
        %v565 = vadd.f32 %v559, 1.0
        %v566 = vadd.f32 %v561, 1.0
        %v567 = vadd.f32 %v563, 1.0
        %v568 = vrcp.pop %v564
        %v569 = vmul.f32 1.0, %v568
        %v570 = vrcp.pop %v565
        %v571 = vmul.f32 1.0, %v570
        %v572 = vrcp.pop %v566
        %v573 = vmul.f32 1.0, %v572
        %v574 = vrcp.pop %v567
        %v575 = vmul.f32 1.0, %v574
        %v576 = vmul.f32 %v544, %v569
        %v577 = vmul.f32 %v546, %v571
        %v578 = vmul.f32 %v548, %v573
        %v579 = vmul.f32 %v550, %v575
        %v580 = vpack.c.bf16 %v578, %v576
        %v581 = vpack.c.bf16 %v579, %v577
        %v582 = vld [vmem:[#allocation4] sm:$0xff]
        %v583 = vld [vmem:[#allocation4 + $0x8] sm:$0xff]
        %v584 = vld [vmem:[#allocation4 + $0x10] sm:$0xff]
        %v585 = vld [vmem:[#allocation4 + $0x18] sm:$0xff]
        %v586 = vld [vmem:[#allocation4 + $0x20] sm:$0xff]
        %v587 = vld [vmem:[#allocation4 + $0x28] sm:$0xff]
        %v588 = vld [vmem:[#allocation4 + $0x30] sm:$0xff]
        %v589 = vld [vmem:[#allocation4 + $0x38] sm:$0xff]
        %v590 = vld [vmem:[#allocation4 + $0x40] sm:$0xff]
        %v591 = vld [vmem:[#allocation4 + $0x48] sm:$0xff]
        %v592 = vld [vmem:[#allocation4 + $0x50] sm:$0xff]
        %v593 = vld [vmem:[#allocation4 + $0x58] sm:$0xff]
        %v594 = vld [vmem:[#allocation4 + $0x60] sm:$0xff]
        %v595 = vld [vmem:[#allocation4 + $0x68] sm:$0xff]
        %v596 = vld [vmem:[#allocation4 + $0x70] sm:$0xff]
        %v597 = vld [vmem:[#allocation4 + $0x78] sm:$0xff]
        %v598 = vld [vmem:[#allocation4 + $0x80] sm:$0xff]
        %v599 = vld [vmem:[#allocation4 + $0x88] sm:$0xff]
        %v600 = vld [vmem:[#allocation4 + $0x90] sm:$0xff]
        %v601 = vld [vmem:[#allocation4 + $0x98] sm:$0xff]
        %v602 = vld [vmem:[#allocation4 + $0xa0] sm:$0xff]
        %v603 = vld [vmem:[#allocation4 + $0xa8] sm:$0xff]
        %v604 = vld [vmem:[#allocation4 + $0xb0] sm:$0xff]
        %v605 = vld [vmem:[#allocation4 + $0xb8] sm:$0xff]
        %v606 = vld [vmem:[#allocation4 + $0xc0] sm:$0xff]
        %v607 = vld [vmem:[#allocation4 + $0xc8] sm:$0xff]
        %v608 = vld [vmem:[#allocation4 + $0xd0] sm:$0xff]
        %v609 = vld [vmem:[#allocation4 + $0xd8] sm:$0xff]
        %v610 = vld [vmem:[#allocation4 + $0xe0] sm:$0xff]
        %v611 = vld [vmem:[#allocation4 + $0xe8] sm:$0xff]
        %v612 = vld [vmem:[#allocation4 + $0xf0] sm:$0xff]
        %v613 = vld [vmem:[#allocation4 + $0xf8] sm:$0xff]
        %v614 = vld [vmem:[%s5] sm:$0x3]
        %v616 = vlaneseq
        %v617 = vshrl.u32 %v616, 7
        %v618 = vsub.s32 0, %v617
        %v619 = vrot.slane %v614, %v618
        %v620 = vlaneseq
        %v621 = vshrl.u32 %v620, 7
        %v622 = vsub.s32 1, %v621
        %v623 = vrot.slane %v614, %v622
        %v658 = vunpack.c.l.b16 %v582
        %v659 = vunpack.c.h.b16 %v582
        %v660 = vunpack.c.l.b16 %v583
        %v661 = vunpack.c.h.b16 %v583
        %v662 = vunpack.c.l.b16 %v584
        %v663 = vunpack.c.h.b16 %v584
        %v664 = vunpack.c.l.b16 %v585
        %v665 = vunpack.c.h.b16 %v585
        %v666 = vunpack.c.l.b16 %v586
        %v667 = vunpack.c.h.b16 %v586
        %v668 = vunpack.c.l.b16 %v587
        %v669 = vunpack.c.h.b16 %v587
        %v670 = vunpack.c.l.b16 %v588
        %v671 = vunpack.c.h.b16 %v588
        %v672 = vunpack.c.l.b16 %v589
        %v673 = vunpack.c.h.b16 %v589
        %v674 = vunpack.c.l.b16 %v590
        %v675 = vunpack.c.h.b16 %v590
        %v676 = vunpack.c.l.b16 %v591
        %v677 = vunpack.c.h.b16 %v591
        %v678 = vunpack.c.l.b16 %v592
        %v679 = vunpack.c.h.b16 %v592
        %v680 = vunpack.c.l.b16 %v593
        %v681 = vunpack.c.h.b16 %v593
        %v682 = vunpack.c.l.b16 %v594
        %v683 = vunpack.c.h.b16 %v594
        %v684 = vunpack.c.l.b16 %v595
        %v685 = vunpack.c.h.b16 %v595
        %v686 = vunpack.c.l.b16 %v596
        %v687 = vunpack.c.h.b16 %v596
        %v688 = vunpack.c.l.b16 %v597
        %v689 = vunpack.c.h.b16 %v597
        %v690 = vunpack.c.l.b16 %v598
        %v691 = vunpack.c.h.b16 %v598
        %v692 = vunpack.c.l.b16 %v599
        %v693 = vunpack.c.h.b16 %v599
        %v694 = vunpack.c.l.b16 %v600
        %v695 = vunpack.c.h.b16 %v600
        %v696 = vunpack.c.l.b16 %v601
        %v697 = vunpack.c.h.b16 %v601
        %v698 = vunpack.c.l.b16 %v602
        %v699 = vunpack.c.h.b16 %v602
        %v700 = vunpack.c.l.b16 %v603
        %v701 = vunpack.c.h.b16 %v603
        %v702 = vunpack.c.l.b16 %v604
        %v703 = vunpack.c.h.b16 %v604
        %v704 = vunpack.c.l.b16 %v605
        %v705 = vunpack.c.h.b16 %v605
        %v706 = vunpack.c.l.b16 %v606
        %v707 = vunpack.c.h.b16 %v606
        %v708 = vunpack.c.l.b16 %v607
        %v709 = vunpack.c.h.b16 %v607
        %v710 = vunpack.c.l.b16 %v608
        %v711 = vunpack.c.h.b16 %v608
        %v712 = vunpack.c.l.b16 %v609
        %v713 = vunpack.c.h.b16 %v609
        %v714 = vunpack.c.l.b16 %v610
        %v715 = vunpack.c.h.b16 %v610
        %v716 = vunpack.c.l.b16 %v611
        %v717 = vunpack.c.h.b16 %v611
        %v718 = vunpack.c.l.b16 %v612
        %v719 = vunpack.c.h.b16 %v612
        %v720 = vunpack.c.l.b16 %v613
        %v721 = vunpack.c.h.b16 %v613
        %v722 = vpack.c.b16 %v660, %v658
        %v723 = vpack.c.b16 %v661, %v659
        %v724 = vpack.c.b16 %v664, %v662
        %v725 = vpack.c.b16 %v665, %v663
        %v726 = vpack.c.b16 %v668, %v666
        %v727 = vpack.c.b16 %v669, %v667
        %v728 = vpack.c.b16 %v672, %v670
        %v729 = vpack.c.b16 %v673, %v671
        %v730 = vpack.c.b16 %v676, %v674
        %v731 = vpack.c.b16 %v677, %v675
        %v732 = vpack.c.b16 %v680, %v678
        %v733 = vpack.c.b16 %v681, %v679
        %v734 = vpack.c.b16 %v684, %v682
        %v735 = vpack.c.b16 %v685, %v683
        %v736 = vpack.c.b16 %v688, %v686
        %v737 = vpack.c.b16 %v689, %v687
        %v738 = vpack.c.b16 %v692, %v690
        %v739 = vpack.c.b16 %v693, %v691
        %v740 = vpack.c.b16 %v696, %v694
        %v741 = vpack.c.b16 %v697, %v695
        %v742 = vpack.c.b16 %v700, %v698
        %v743 = vpack.c.b16 %v701, %v699
        %v744 = vpack.c.b16 %v704, %v702
        %v745 = vpack.c.b16 %v705, %v703
        %v746 = vpack.c.b16 %v708, %v706
        %v747 = vpack.c.b16 %v709, %v707
        %v748 = vpack.c.b16 %v712, %v710
        %v749 = vpack.c.b16 %v713, %v711
        %v750 = vpack.c.b16 %v716, %v714
        %v751 = vpack.c.b16 %v717, %v715
        %v752 = vpack.c.b16 %v720, %v718
        %v753 = vpack.c.b16 %v721, %v719
        %786 = vmatprep.subr.bf16.mxu0 %v723
        %787 = vmatpush1.bf16.msra.mxu0 %v722
        %788 = vmatprep.subr.bf16.mxu0 %v725
        %789 = vmatpush1.bf16.msra.mxu0 %v724
        %790 = vmatprep.subr.bf16.mxu0 %v727
        %791 = vmatpush1.bf16.msra.mxu0 %v726
        %792 = vmatprep.subr.bf16.mxu0 %v729
        %793 = vmatpush1.bf16.msra.mxu0 %v728
        %794 = vmatprep.subr.bf16.mxu0 %v731
        %795 = vmatpush1.bf16.msra.mxu0 %v730
        %796 = vmatprep.subr.bf16.mxu0 %v733
        %797 = vmatpush1.bf16.msra.mxu0 %v732
        %798 = vmatprep.subr.bf16.mxu0 %v735
        %799 = vmatpush1.bf16.msra.mxu0 %v734
        %800 = vmatprep.subr.bf16.mxu0 %v737
        %801 = vmatpush1.bf16.msra.mxu0 %v736
        %802 = vmatprep.subr.bf16.mxu0 %v739
        %803 = vmatpush1.bf16.msra.mxu0 %v738
        %804 = vmatprep.subr.bf16.mxu0 %v741
        %805 = vmatpush1.bf16.msra.mxu0 %v740
        %806 = vmatprep.subr.bf16.mxu0 %v743
        %807 = vmatpush1.bf16.msra.mxu0 %v742
        %808 = vmatprep.subr.bf16.mxu0 %v745
        %809 = vmatpush1.bf16.msra.mxu0 %v744
        %810 = vmatprep.subr.bf16.mxu0 %v747
        %811 = vmatpush1.bf16.msra.mxu0 %v746
        %812 = vmatprep.subr.bf16.mxu0 %v749
        %813 = vmatpush1.bf16.msra.mxu0 %v748
        %814 = vmatprep.subr.bf16.mxu0 %v751
        %815 = vmatpush1.bf16.msra.mxu0 %v750
        %816 = vmatprep.subr.bf16.mxu0 %v753
        %817 = vmatpush1.bf16.msra.mxu0 %v752
        %818 = vmatprep.mubr.bf16.mxu0 %v581
        %819 = vmatmul.mubr.bf16.gmra.mrb[0].mxu0 %v580
        %v820 = vpop.f32.mrb[0].mxu0
        %v821 = vadd.f32 %v619, %v820
        %v822 = vpop.f32.mrb[0].mxu0
        %v823 = vadd.f32 %v623, %v822
        %v824 = vpop.f32.mrb[0].mxu0
        %v825 = vadd.f32 %v619, %v824
        %v826 = vpop.f32.mrb[0].mxu0
        %v827 = vadd.f32 %v623, %v826
        %828 = vdwg.mxu0
        %829 = vst [vmem:[%s374] sm:$0xff] %v821
        %830 = vst [vmem:[%s374 + $0x8] sm:$0xff] %v825
        %831 = vst [vmem:[%s384] sm:$0xff] %v823
        %832 = vst [vmem:[%s384 + $0x8] sm:$0xff] %v827
        %s833 = smul.u32 2, %s26
        %p834 = scmp.lt.s32.totalorder %s25, 1
        %s835 = scalar_select %p834, %s25, 1
        %p836 = scmp.lt.s32.totalorder %s833, 1
        %s837 = scalar_select %p836, %s833, 1
        %s838 = smul.addr %s835, 2
        %s839 = sadd.s32 %s837, %s838
        %s840 = smul.addr %s839, 8
        %s841 = scalar_lea.vmem %s6, %s840
        %s842 = smul.u32 2, %s26
        %p843 = scmp.lt.s32.totalorder %s25, 1
        %s844 = scalar_select %p843, %s25, 1
        %p845 = scmp.lt.s32.totalorder %s842, 1
        %s846 = scalar_select %p845, %s842, 1
        %s847 = smul.addr %s844, 2
        %s848 = sadd.s32 %s846, %s847
        %s849 = smul.addr %s848, 8
        %s850 = scalar_lea.vmem %s7, %s849
        // Predicated region
        $region53: #{split_vector_diffusion_forward.1} parent=43 // pred_check
          %p851 = pneg %p191
        $region54: #{split_vector_diffusion_forward.1} parent=43 // pred_check_branch
          %853 = sbr.rel (%p851) target = $region56
        $region55: #{split_vector_diffusion_forward.1} parent=43 // pred_region
          %s854 = smul.u32 2, %s26
        $region56: #{split_vector_diffusion_forward.1} parent=43 // pred_fallthru
          _
        // Predicated region
        $region57: #{split_vector_diffusion_forward.1} parent=43 // pred_check
          %p855 = pneg %p219
        $region58: #{split_vector_diffusion_forward.1} parent=43 // pred_check_branch
          %857 = sbr.rel (%p855) target = $region60
        $region59: #{split_vector_diffusion_forward.1} parent=43 // pred_region
          %s858 = smul.u32 2, %s26
        $region60: #{split_vector_diffusion_forward.1} parent=43 // pred_fallthru
          _
      $region44: #{split_vector_diffusion_forward.1} parent=5 // pred_fallthru
        _
      %p859 = scmp.le.s32.totalorder 2, %s16
      // Predicated region
      $region61: #{split_vector_diffusion_forward.1} parent=5 // pred_check
        %p860 = pneg %p859
      $region62: #{split_vector_diffusion_forward.1} parent=5 // pred_check_branch
        %862 = sbr.rel (%p860) target = $region64
      $region63: #{split_vector_diffusion_forward.1} parent=5 // pred_region
        %s863 = ssub.s32 %s16, 2
        // Predicated region
        $region65: #{split_vector_diffusion_forward.1} parent=63 // pred_check
          %p864 = pneg %p197
        $region66: #{split_vector_diffusion_forward.1} parent=63 // pred_check_branch
          %866 = sbr.rel (%p864) target = $region68
        $region67: #{split_vector_diffusion_forward.1} parent=63 // pred_region
          %s867 = smul.u32 2, %s28
          %p868 = scmp.lt.s32.totalorder %s27, 1
          %s869 = scalar_select %p868, %s27, 1
          %p870 = scmp.lt.s32.totalorder %s867, 1
          %s871 = scalar_select %p870, %s867, 1
          %s872 = smul.addr %s869, 2
          %s873 = sadd.s32 %s871, %s872
          %s874 = smul.addr %s873, 8
          %s875 = scalar_lea.vmem %s6, %s874
        $region68: #{split_vector_diffusion_forward.1} parent=63 // pred_fallthru
          _
        // Predicated region
        $region69: #{split_vector_diffusion_forward.1} parent=63 // pred_check
          %p876 = pneg %p225
        $region70: #{split_vector_diffusion_forward.1} parent=63 // pred_check_branch
          %878 = sbr.rel (%p876) target = $region72
        $region71: #{split_vector_diffusion_forward.1} parent=63 // pred_region
          %s879 = smul.u32 2, %s28
          %p880 = scmp.lt.s32.totalorder %s27, 1
          %s881 = scalar_select %p880, %s27, 1
          %p882 = scmp.lt.s32.totalorder %s879, 1
          %s883 = scalar_select %p882, %s879, 1
          %s884 = smul.addr %s881, 2
          %s885 = sadd.s32 %s883, %s884
          %s886 = smul.addr %s885, 8
          %s887 = scalar_lea.vmem %s7, %s886
        $region72: #{split_vector_diffusion_forward.1} parent=63 // pred_fallthru
          _
      $region64: #{split_vector_diffusion_forward.1} parent=5 // pred_fallthru
        _
    $region6: #{split_vector_diffusion_forward.1} parent=1 // loop_footer
      %s20 = sadd.s32 1, %s16
    $region7: #{split_vector_diffusion_forward.1} parent=1 // loop_footer_branch
      %15 = sbr.rel target = $region3
    $region8: #{split_vector_diffusion_forward.1} parent=1 // loop_exit
      _
    %888 = vsyncpa [#allocation3], 1
    %s889 = scalar_lea.sflag [#allocation3], 1
    %890 = vsyncpa %s889, 1
    %891 = vsyncpa [#allocation5], 1

</llo_original>
